<compile_context>
chip_gen: v6e
topology: v6e:2x2x1
jax: 0.10.0
libtpu: 0.0.40
codegen_flags: <defaults>
</compile_context>

<pallas_src>
import functools

import jax
import jax.numpy as jnp
from jax.experimental import pallas as pl
from jax.experimental.pallas import tpu as pltpu


def _conv_rel_pos_enc_kernel(q_ref, v_ref, w_ref, b_ref, o_ref, vpad_ref,
                             *, H, W, Ch, K):
    """One grid step: out = q * (depthwise KxK conv of v + bias) for GB heads.

    q_ref, v_ref, o_ref : (1, GB, H, W*Ch)   lane-dense head images
    w_ref               : (GB, K*K, W*Ch)    per-channel taps, pre-tiled over W
    b_ref               : (GB, 1, W*Ch)      per-channel bias, pre-tiled over W
    vpad_ref            : (GB, H+2p, (W+2p)*Ch) f32 VMEM scratch (zero halo)
    """
    p = K // 2
    WC = W * Ch

    # Zero halo (skipped when K == 1) then drop the v image into the interior.
    if p:
        vpad_ref[...] = jnp.zeros(vpad_ref.shape, vpad_ref.dtype)
    vpad_ref[:, p:p + H, p * Ch:p * Ch + WC] = v_ref[0].astype(jnp.float32)

    # K*K tap loop: each tap is a static (dy, dx) window of the padded image.
    # In the flattened (row, x*Ch + c) layout the dx shift is a contiguous
    # lane-offset slice of dx*Ch.
    acc = b_ref[...].astype(jnp.float32) * jnp.ones((1, H, 1), jnp.float32)
    for dy in range(K):                                  # static unroll
        for dx in range(K):
            idx = dy * K + dx
            tap = w_ref[:, idx:idx + 1, :].astype(jnp.float32)      # (GB,1,WC)
            acc = acc + vpad_ref[:, dy:dy + H, dx * Ch:dx * Ch + WC] * tap

    o_ref[0] = (q_ref[0].astype(jnp.float32) * acc).astype(o_ref.dtype)


def conv_rel_pos_enc(q, v, size, window, params):
    """Pallas forward of ConvRelPosEnc.

    q, v    : (B, h, N, Ch) with N == H * W
    size    : (H, W)
    window  : int (same window for all heads) or dict {window: num_heads_in_split}
    params  : list of (weight, bias) per split, PyTorch depthwise-Conv2d layout:
              weight (split_heads*Ch, 1, K, K), bias (split_heads*Ch,)
    returns : (B, h, N, Ch)
    """
    B, h, N, Ch = q.shape
    H, W = size
    assert N == H * W, "sequence length must equal H*W"
    if isinstance(window, int):
        window = {window: h}
    assert sum(window.values()) == h
    assert len(params) == len(window)

    WC = W * Ch
    # Free reshapes only -- no transposes, no HBM copies.
    q4 = q.reshape(B, h, H, WC)
    v4 = v.reshape(B, h, H, WC)

    outs = []
    base = 0
    for (K, G), (wgt, bia) in zip(window.items(), params):
        assert K % 2 == 1, "window size must be odd for 'same' padding"
        K2 = K * K
        p = K // 2

        # Heads per grid step: take the whole split at once when its first head
        # lands on a block boundary (always true for the int-window case).
        GB = G if (base % G == 0 and h % G == 0) else 1

        # (G*Ch, 1, K, K) -> (G, K*K, Ch) -> tile across W -> (G, K*K, W*Ch).
        w_g = jnp.transpose(jnp.asarray(wgt).reshape(G, Ch, K2), (0, 2, 1))
        w_g = jnp.broadcast_to(w_g[:, :, None, :], (G, K2, W, Ch)).reshape(G, K2, WC)
        b_g = jnp.asarray(bia).reshape(G, 1, 1, Ch)
        b_g = jnp.broadcast_to(b_g, (G, 1, W, Ch)).reshape(G, 1, WC)

        kernel = functools.partial(_conv_rel_pos_enc_kernel, H=H, W=W, Ch=Ch, K=K)

        def qv_map(b_i, j, _o=base // GB):
            return (b_i, _o + j, 0, 0)

        def wb_map(b_i, j):
            return (j, 0, 0)

        def out_map(b_i, j):
            return (b_i, j, 0, 0)

        out_g = pl.pallas_call(
            kernel,
            out_shape=jax.ShapeDtypeStruct((B, G, H, WC), q.dtype),
            grid=(B, G // GB),
            in_specs=[
                pl.BlockSpec((1, GB, H, WC), qv_map),
                pl.BlockSpec((1, GB, H, WC), qv_map),
                pl.BlockSpec((GB, K2, WC), wb_map),
                pl.BlockSpec((GB, 1, WC), wb_map),
            ],
            out_specs=pl.BlockSpec((1, GB, H, WC), out_map),
            scratch_shapes=[
                pltpu.VMEM((GB, H + 2 * p, (W + 2 * p) * Ch), jnp.float32)],
            compiler_params=pltpu.CompilerParams(
                dimension_semantics=("parallel", "parallel")),
        )(q4, v4, w_g, b_g)

        outs.append(out_g.reshape(B, G, N, Ch))
        base += G

    if len(outs) == 1:
        return outs[0]
    # TODO(synk): the multi-split case pays one extra HBM pass for the head
    # concatenation; a single aliased output buffer would avoid it.
    return jnp.concatenate(outs, axis=1)


def _reference_conv_rel_pos_enc(q, v, size, window, params):
    """Pure-jnp reference mirroring the PyTorch module (elementwise math only)."""
    B, h, N, Ch = q.shape
    H, W = size
    if isinstance(window, int):
        window = {window: h}
    # 'B h (H W) Ch -> B (h Ch) H W'
    v_img = jnp.transpose(v.reshape(B, h, H, W, Ch), (0, 1, 4, 2, 3)).reshape(B, h * Ch, H, W)
    outs = []
    c0 = 0
    for (K, G), (wgt, bia) in zip(window.items(), params):
        Cg = G * Ch
        p = K // 2
        x = v_img[:, c0:c0 + Cg]
        xp = jnp.pad(x, ((0, 0), (0, 0), (p, p), (p, p)))
        w = jnp.asarray(wgt).reshape(Cg, K, K)
        o = jnp.zeros_like(x)
        for dy in range(K):
            for dx in range(K):
                o = o + xp[:, :, dy:dy + H, dx:dx + W] * w[:, dy, dx][None, :, None, None]
        o = o + jnp.asarray(bia)[None, :, None, None]
        outs.append(o)
        c0 += Cg
    conv_v = jnp.concatenate(outs, axis=1) if len(outs) > 1 else outs[0]
    # 'B (h Ch) H W -> B h (H W) Ch'
    conv_v = jnp.transpose(conv_v.reshape(B, h, Ch, H, W), (0, 1, 3, 4, 2)).reshape(B, h, N, Ch)
    return q * conv_v


if __name__ == "__main__":
    key = jax.random.PRNGKey(0)
    kq, kv, kw, kb = jax.random.split(key, 4)

    # Small shapes consistent with the module: q/v are (B, h, H*W, Ch).
    B, num_heads, Ch = 2, 2, 4
    H = W = 16
    N = H * W
    window = 3                                   # int form -> {3: num_heads}

    q = jax.random.normal(kq, (B, num_heads, N, Ch), dtype=jnp.float32)
    v = jax.random.normal(kv, (B, num_heads, N, Ch), dtype=jnp.float32)

    # Single split: depthwise Conv2d(C, C, K, groups=C) params in PyTorch layout.
    C = num_heads * Ch
    wgt = jax.random.normal(kw, (C, 1, window, window), jnp.float32) * 0.2
    bia = jax.random.normal(kb, (C,), jnp.float32) * 0.1
    params = [(wgt, bia)]

    out = conv_rel_pos_enc(q, v, (H, W), window, params)
    out = jax.block_until_ready(out)
    ref = _reference_conv_rel_pos_enc(q, v, (H, W), window, params)
    assert out.shape == (B, num_heads, N, Ch)
    assert jnp.allclose(out, ref, atol=1e-4, rtol=1e-4), float(jnp.max(jnp.abs(out - ref)))

    # Also exercise the dict-of-windows form: {window 1: 1 head, window 3: 1 head}.
    window2 = {1: 1, 3: 1}
    k1, k2, k3, k4 = jax.random.split(jax.random.PRNGKey(1), 4)
    params2 = [
        (jax.random.normal(k1, (Ch, 1, 1, 1), jnp.float32) * 0.2,
         jax.random.normal(k2, (Ch,), jnp.float32) * 0.1),
        (jax.random.normal(k3, (Ch, 1, 3, 3), jnp.float32) * 0.2,
         jax.random.normal(k4, (Ch,), jnp.float32) * 0.1),
    ]
    out2 = jax.block_until_ready(conv_rel_pos_enc(q, v, (H, W), window2, params2))
    ref2 = _reference_conv_rel_pos_enc(q, v, (H, W), window2, params2)
    assert jnp.allclose(out2, ref2, atol=1e-4, rtol=1e-4), float(jnp.max(jnp.abs(out2 - ref2)))

    print("KERNEL_OK")
</pallas_src>

<mosaic_0001>
module attributes {stable_mosaic.version = 11 : i64} {
  func.func @_conv_rel_pos_enc_kernel(%arg0: i32, %arg1: i32, %arg2: memref<1x2x16x64xf32, #tpu.memory_space<vmem>>, %arg3: memref<1x2x16x64xf32, #tpu.memory_space<vmem>>, %arg4: memref<2x9x64xf32, #tpu.memory_space<vmem>>, %arg5: memref<2x1x64xf32, #tpu.memory_space<vmem>>, %arg6: memref<1x2x16x64xf32, #tpu.memory_space<vmem>>, %arg7: memref<2x18x72xf32, #tpu.memory_space<vmem>>) attributes {dimension_semantics = [#tpu.dimension_semantics<parallel>, #tpu.dimension_semantics<parallel>], iteration_bounds = array<i64: 2, 1>, scalar_prefetch = 0 : i64, scratch_operands = 1 : i64, tpu.core_type = #tpu.core_type<tc>, window_params = [{transform_indices = @transform_0, window_bounds = array<i64: 1, 2, 16, 64>}, {transform_indices = @transform_1, window_bounds = array<i64: 1, 2, 16, 64>}, {transform_indices = @transform_2, window_bounds = array<i64: 2, 9, 64>}, {transform_indices = @transform_3, window_bounds = array<i64: 2, 1, 64>}, {transform_indices = @transform_4, window_bounds = array<i64: 1, 2, 16, 64>}]} {
    %cst = arith.constant 0.000000e+00 : f32
    %0 = vector.broadcast %cst : f32 to vector<2x18x72xf32>
    %c0 = arith.constant 0 : index
    %c0_0 = arith.constant 0 : index
    %c0_1 = arith.constant 0 : index
    %1 = vector.load %arg7[%c0, %c0_0, %c0_1] : memref<2x18x72xf32, #tpu.memory_space<vmem>>, vector<2x18x72xf32>
    tpu.vector_store %arg7[%c0, %c0_0, %c0_1], %0 {strides = array<i32>} : memref<2x18x72xf32, #tpu.memory_space<vmem>>, vector<2x18x72xf32>,
    %c0_2 = arith.constant 0 : index
    %c0_3 = arith.constant 0 : index
    %c0_4 = arith.constant 0 : index
    %c0_5 = arith.constant 0 : index
    %2 = vector.load %arg3[%c0_2, %c0_3, %c0_4, %c0_5] : memref<1x2x16x64xf32, #tpu.memory_space<vmem>>, vector<1x2x16x64xf32>
    %3 = vector.shape_cast %2 : vector<1x2x16x64xf32> to vector<2x16x64xf32>
    %c0_6 = arith.constant 0 : index
    %c1 = arith.constant 1 : index
    %c4 = arith.constant 4 : index
    %4 = vector.load %arg7[%c0_6, %c1, %c4] : memref<2x18x72xf32, #tpu.memory_space<vmem>>, vector<2x16x64xf32>
    tpu.vector_store %arg7[%c0_6, %c1, %c4], %3 {strides = array<i32>} : memref<2x18x72xf32, #tpu.memory_space<vmem>>, vector<2x16x64xf32>,
    %c0_7 = arith.constant 0 : index
    %c0_8 = arith.constant 0 : index
    %c0_9 = arith.constant 0 : index
    %5 = vector.load %arg5[%c0_7, %c0_8, %c0_9] : memref<2x1x64xf32, #tpu.memory_space<vmem>>, vector<2x1x64xf32>
    %cst_10 = arith.constant 1.000000e+00 : f32
    %6 = vector.broadcast %cst_10 : f32 to vector<1x16x1xf32>
    %7 = vector.broadcast %5 : vector<2x1x64xf32> to vector<2x16x64xf32>
    %8 = vector.broadcast %6 : vector<1x16x1xf32> to vector<2x16x64xf32>
    %9 = arith.mulf %7, %8 : vector<2x16x64xf32>
    %c0_11 = arith.constant 0 : index
    %c0_12 = arith.constant 0 : index
    %c0_13 = arith.constant 0 : index
    %10 = vector.load %arg4[%c0_11, %c0_12, %c0_13] : memref<2x9x64xf32, #tpu.memory_space<vmem>>, vector<2x1x64xf32>
    %c0_14 = arith.constant 0 : index
    %c0_15 = arith.constant 0 : index
    %c0_16 = arith.constant 0 : index
    %11 = vector.load %arg7[%c0_14, %c0_15, %c0_16] : memref<2x18x72xf32, #tpu.memory_space<vmem>>, vector<2x16x64xf32>
    %12 = vector.broadcast %10 : vector<2x1x64xf32> to vector<2x16x64xf32>
    %13 = arith.mulf %11, %12 : vector<2x16x64xf32>
    %14 = arith.addf %9, %13 : vector<2x16x64xf32>
    %c0_17 = arith.constant 0 : index
    %c1_18 = arith.constant 1 : index
    %c0_19 = arith.constant 0 : index
    %15 = vector.load %arg4[%c0_17, %c1_18, %c0_19] : memref<2x9x64xf32, #tpu.memory_space<vmem>>, vector<2x1x64xf32>
    %c0_20 = arith.constant 0 : index
    %c0_21 = arith.constant 0 : index
    %c4_22 = arith.constant 4 : index
    %16 = vector.load %arg7[%c0_20, %c0_21, %c4_22] : memref<2x18x72xf32, #tpu.memory_space<vmem>>, vector<2x16x64xf32>
    %17 = vector.broadcast %15 : vector<2x1x64xf32> to vector<2x16x64xf32>
    %18 = arith.mulf %16, %17 : vector<2x16x64xf32>
    %19 = arith.addf %14, %18 : vector<2x16x64xf32>
    %c0_23 = arith.constant 0 : index
    %c2 = arith.constant 2 : index
    %c0_24 = arith.constant 0 : index
    %20 = vector.load %arg4[%c0_23, %c2, %c0_24] : memref<2x9x64xf32, #tpu.memory_space<vmem>>, vector<2x1x64xf32>
    %c0_25 = arith.constant 0 : index
    %c0_26 = arith.constant 0 : index
    %c8 = arith.constant 8 : index
    %21 = vector.load %arg7[%c0_25, %c0_26, %c8] : memref<2x18x72xf32, #tpu.memory_space<vmem>>, vector<2x16x64xf32>
    %22 = vector.broadcast %20 : vector<2x1x64xf32> to vector<2x16x64xf32>
    %23 = arith.mulf %21, %22 : vector<2x16x64xf32>
    %24 = arith.addf %19, %23 : vector<2x16x64xf32>
    %c0_27 = arith.constant 0 : index
    %c3 = arith.constant 3 : index
    %c0_28 = arith.constant 0 : index
    %25 = vector.load %arg4[%c0_27, %c3, %c0_28] : memref<2x9x64xf32, #tpu.memory_space<vmem>>, vector<2x1x64xf32>
    %c0_29 = arith.constant 0 : index
    %c1_30 = arith.constant 1 : index
    %c0_31 = arith.constant 0 : index
    %26 = vector.load %arg7[%c0_29, %c1_30, %c0_31] : memref<2x18x72xf32, #tpu.memory_space<vmem>>, vector<2x16x64xf32>
    %27 = vector.broadcast %25 : vector<2x1x64xf32> to vector<2x16x64xf32>
    %28 = arith.mulf %26, %27 : vector<2x16x64xf32>
    %29 = arith.addf %24, %28 : vector<2x16x64xf32>
    %c0_32 = arith.constant 0 : index
    %c4_33 = arith.constant 4 : index
    %c0_34 = arith.constant 0 : index
    %30 = vector.load %arg4[%c0_32, %c4_33, %c0_34] : memref<2x9x64xf32, #tpu.memory_space<vmem>>, vector<2x1x64xf32>
    %c0_35 = arith.constant 0 : index
    %c1_36 = arith.constant 1 : index
    %c4_37 = arith.constant 4 : index
    %31 = vector.load %arg7[%c0_35, %c1_36, %c4_37] : memref<2x18x72xf32, #tpu.memory_space<vmem>>, vector<2x16x64xf32>
    %32 = vector.broadcast %30 : vector<2x1x64xf32> to vector<2x16x64xf32>
    %33 = arith.mulf %31, %32 : vector<2x16x64xf32>
    %34 = arith.addf %29, %33 : vector<2x16x64xf32>
    %c0_38 = arith.constant 0 : index
    %c5 = arith.constant 5 : index
    %c0_39 = arith.constant 0 : index
    %35 = vector.load %arg4[%c0_38, %c5, %c0_39] : memref<2x9x64xf32, #tpu.memory_space<vmem>>, vector<2x1x64xf32>
    %c0_40 = arith.constant 0 : index
    %c1_41 = arith.constant 1 : index
    %c8_42 = arith.constant 8 : index
    %36 = vector.load %arg7[%c0_40, %c1_41, %c8_42] : memref<2x18x72xf32, #tpu.memory_space<vmem>>, vector<2x16x64xf32>
    %37 = vector.broadcast %35 : vector<2x1x64xf32> to vector<2x16x64xf32>
    %38 = arith.mulf %36, %37 : vector<2x16x64xf32>
    %39 = arith.addf %34, %38 : vector<2x16x64xf32>
    %c0_43 = arith.constant 0 : index
    %c6 = arith.constant 6 : index
    %c0_44 = arith.constant 0 : index
    %40 = vector.load %arg4[%c0_43, %c6, %c0_44] : memref<2x9x64xf32, #tpu.memory_space<vmem>>, vector<2x1x64xf32>
    %c0_45 = arith.constant 0 : index
    %c2_46 = arith.constant 2 : index
    %c0_47 = arith.constant 0 : index
    %41 = vector.load %arg7[%c0_45, %c2_46, %c0_47] : memref<2x18x72xf32, #tpu.memory_space<vmem>>, vector<2x16x64xf32>
    %42 = vector.broadcast %40 : vector<2x1x64xf32> to vector<2x16x64xf32>
    %43 = arith.mulf %41, %42 : vector<2x16x64xf32>
    %44 = arith.addf %39, %43 : vector<2x16x64xf32>
    %c0_48 = arith.constant 0 : index
    %c7 = arith.constant 7 : index
    %c0_49 = arith.constant 0 : index
    %45 = vector.load %arg4[%c0_48, %c7, %c0_49] : memref<2x9x64xf32, #tpu.memory_space<vmem>>, vector<2x1x64xf32>
    %c0_50 = arith.constant 0 : index
    %c2_51 = arith.constant 2 : index
    %c4_52 = arith.constant 4 : index
    %46 = vector.load %arg7[%c0_50, %c2_51, %c4_52] : memref<2x18x72xf32, #tpu.memory_space<vmem>>, vector<2x16x64xf32>
    %47 = vector.broadcast %45 : vector<2x1x64xf32> to vector<2x16x64xf32>
    %48 = arith.mulf %46, %47 : vector<2x16x64xf32>
    %49 = arith.addf %44, %48 : vector<2x16x64xf32>
    %c0_53 = arith.constant 0 : index
    %c8_54 = arith.constant 8 : index
    %c0_55 = arith.constant 0 : index
    %50 = vector.load %arg4[%c0_53, %c8_54, %c0_55] : memref<2x9x64xf32, #tpu.memory_space<vmem>>, vector<2x1x64xf32>
    %c0_56 = arith.constant 0 : index
    %c2_57 = arith.constant 2 : index
    %c8_58 = arith.constant 8 : index
    %51 = vector.load %arg7[%c0_56, %c2_57, %c8_58] : memref<2x18x72xf32, #tpu.memory_space<vmem>>, vector<2x16x64xf32>
    %52 = vector.broadcast %50 : vector<2x1x64xf32> to vector<2x16x64xf32>
    %53 = arith.mulf %51, %52 : vector<2x16x64xf32>
    %54 = arith.addf %49, %53 : vector<2x16x64xf32>
    %c0_59 = arith.constant 0 : index
    %c0_60 = arith.constant 0 : index
    %c0_61 = arith.constant 0 : index
    %c0_62 = arith.constant 0 : index
    %55 = vector.load %arg2[%c0_59, %c0_60, %c0_61, %c0_62] : memref<1x2x16x64xf32, #tpu.memory_space<vmem>>, vector<1x2x16x64xf32>
    %56 = vector.shape_cast %55 : vector<1x2x16x64xf32> to vector<2x16x64xf32>
    %57 = arith.mulf %56, %54 : vector<2x16x64xf32>
    %c0_63 = arith.constant 0 : index
    %c0_64 = arith.constant 0 : index
    %c0_65 = arith.constant 0 : index
    %c0_66 = arith.constant 0 : index
    %58 = vector.load %arg6[%c0_63, %c0_64, %c0_65, %c0_66] : memref<1x2x16x64xf32, #tpu.memory_space<vmem>>, vector<1x2x16x64xf32>
    %59 = vector.shape_cast %58 : vector<1x2x16x64xf32> to vector<2x16x64xf32>
    %60 = vector.shape_cast %57 : vector<2x16x64xf32> to vector<1x2x16x64xf32>
    tpu.vector_store %arg6[%c0_63, %c0_64, %c0_65, %c0_66], %60 {strides = array<i32>} : memref<1x2x16x64xf32, #tpu.memory_space<vmem>>, vector<1x2x16x64xf32>,
    return
  }
  func.func @transform_0(%arg0: i32, %arg1: i32) -> (i32, i32, i32, i32) {
    %c0_i32 = arith.constant 0 : i32
    %0 = arith.addi %c0_i32, %arg1 : i32
    %c0_i32_0 = arith.constant 0 : i32
    %c0_i32_1 = arith.constant 0 : i32
    %c0_i32_2 = arith.constant 0 : i32
    return %arg0, %0, %c0_i32_0, %c0_i32_1 : i32, i32, i32, i32
  }
  func.func @transform_1(%arg0: i32, %arg1: i32) -> (i32, i32, i32, i32) {
    %c0_i32 = arith.constant 0 : i32
    %0 = arith.addi %c0_i32, %arg1 : i32
    %c0_i32_0 = arith.constant 0 : i32
    %c0_i32_1 = arith.constant 0 : i32
    %c0_i32_2 = arith.constant 0 : i32
    return %arg0, %0, %c0_i32_0, %c0_i32_1 : i32, i32, i32, i32
  }
  func.func @transform_2(%arg0: i32, %arg1: i32) -> (i32, i32, i32) {
    %c0_i32 = arith.constant 0 : i32
    %c0_i32_0 = arith.constant 0 : i32
    %c0_i32_1 = arith.constant 0 : i32
    return %arg1, %c0_i32, %c0_i32_0 : i32, i32, i32
  }
  func.func @transform_3(%arg0: i32, %arg1: i32) -> (i32, i32, i32) {
    %c0_i32 = arith.constant 0 : i32
    %c0_i32_0 = arith.constant 0 : i32
    %c0_i32_1 = arith.constant 0 : i32
    return %arg1, %c0_i32, %c0_i32_0 : i32, i32, i32
  }
  func.func @transform_4(%arg0: i32, %arg1: i32) -> (i32, i32, i32, i32) {
    %c0_i32 = arith.constant 0 : i32
    %c0_i32_0 = arith.constant 0 : i32
    %c0_i32_1 = arith.constant 0 : i32
    return %arg0, %arg1, %c0_i32, %c0_i32_0 : i32, i32, i32, i32
  }
}

</mosaic_0001>

<llo_original>
// kernel: tpu_custom_call.1
$region0: #{tpu_custom_call.1}
  #allocation0 [shape = 'u32[]', space=smem, size = 0x4, offset = 0x4, fixed_abs, tag = 'smem constant byte address 0x4 - core index']
  #allocation1 [shape = 'u32[144,128]{1,0:T(1,128)}', space=vmem, size = 0x12000, scoped, tag = 'internal scratch']
  #allocation2 [shape = 'f32[2,18,72]{2,1,0:T(8,128)}', space=vmem, size = 0x6000, scoped, tag = 'scratch operand']
  %s0 = inlined_call_operand.hbm [shape: f32[2,2,16,64], index: 0, kind: input, shape index: {}]
  %s1 = inlined_call_operand.hbm [shape: f32[2,2,16,64], index: 1, kind: input, shape index: {}]
  %s2 = inlined_call_operand.vmem [shape: f32[2,9,64], index: 2, kind: input, shape index: {}]
  %s3 = inlined_call_operand.vmem [shape: f32[2,1,64], index: 3, kind: input, shape index: {}]
  %s4 = inlined_call_operand.hbm [shape: f32[2,2,16,64], index: 4, kind: output, shape index: {}]
  %s5 = sld [smem:[#allocation0]]
  $region57: #{tpu_custom_call.1} parent=0
    _
  %s7 = ssub.s32 1, %s5
  %s8 = scalar_select 0, %s7, %s5
  $region1: #{tpu_custom_call.1} parent=0
    #allocation3 [shape = 'u8[32768]{0}', space=vmem, size = 0x8000, scoped, tag = 'input window, operand 0']
    #allocation4 [shape = 's32[2]{0}', space=sflag, size = 0x8, scoped, tag = 'scoped memory for tpu_custom_call.1']
    #allocation5 [shape = 's32[2]{0}', space=sflag, size = 0x8, scoped, tag = 'scoped memory for tpu_custom_call.1']
    #allocation6 [shape = 'u8[32768]{0}', space=vmem, size = 0x8000, scoped, tag = 'input window, operand 1']
    #allocation7 [shape = 's32[2]{0}', space=sflag, size = 0x8, scoped, tag = 'scoped memory for tpu_custom_call.1']
    #allocation8 [shape = 'u8[32768]{0}', space=vmem, size = 0x8000, scoped, tag = 'output window, operand 0']
    %9 = vsyncpa [#allocation4], 0
    %s10 = scalar_lea.sflag [#allocation4], 1
    %11 = vsyncpa %s10, 0
    %12 = vsyncpa [#allocation7], 0
    %s13 = scalar_lea.sflag [#allocation7], 1
    %14 = vsyncpa %s13, 0
    %15 = vsyncpa [#allocation5], 0
    %s16 = scalar_lea.sflag [#allocation5], 1
    %17 = vsyncpa %s16, 0
    loop: start=0, step=1, limit=4
    $region2: #{tpu_custom_call.1} parent=1 // loop_pre_header
      _
    $region3: #{tpu_custom_call.1} parent=1 // loop_header
      %s19 = sphi 0, %s23
      %p20 = scmp.ge.s32.totalorder %s19, 4
      %s26 = sphi 0, %s38
      %s27 = sphi 0, %s34
      %s28 = sphi 0, %s26
      %s29 = sphi 0, %s27
      %s30 = sphi 0, %s28
      %s31 = sphi 0, %s29
      %s43 = sphi 0, %s45
      %s46 = sphi 0, %s43
      %s47 = sphi 0, %s46
      %s63 = sphi 0, %s47
      %s71 = sphi 0, %s73
      %s74 = sphi 0, %s71
      %s75 = sphi 0, %s74
      %s91 = sphi 0, %s75
      %s97 = sphi 0, %s99
      %s100 = sphi 0, %s97
      %s101 = sphi 0, %s100
      %s117 = sphi 0, %s101
      %s123 = sphi 0, %s125
      %s126 = sphi 0, %s123
      %s127 = sphi 0, %s126
      %s143 = sphi 0, %s127
      %s151 = sphi 0, %s153
      %s154 = sphi 0, %s151
      %s155 = sphi 0, %s154
      %s171 = sphi 0, %s155
    $region4: #{tpu_custom_call.1} parent=1 // loop_header_branch
      %22 = sbr.rel (%p20) target = $region8
    $region5: #{tpu_custom_call.1} parent=1 // loop_body
      %s24 = ssub.s32 %s19, 1
      %s25 = ssub.s32 %s19, 2
      %s32 = sadd.s32 1, %s27
      %p33 = scmp.ge.s32.totalorder %s32, 1
      %s34 = scalar_select %p33, 0, %s32
      %s35 = sadd.s32 1, %s26
      %s36 = scalar_select %p33, %s35, %s26
      %p37 = scmp.ge.s32.totalorder %s36, 2
      %s38 = scalar_select %p37, 0, %s36
      %s39 = ssub.s32 %s26, %s38
      %s40 = ssub.s32 %s27, %s34
      %s41 = sor.u32 %s39, %s40
      %p42 = scmp.eq.s32.totalorder %s41, 0
      %s44 = sadd.s32 %s43, 1
      %s45 = scalar_select %p42, %s43, %s44
      %p48 = pneg %p42
      %p49 = scmp.eq.s32.totalorder %s19, 1
      %p50 = por %p48, %p49
      %p51 = scmp.ne.s32.totalorder %s43, %s46
      %p52 = scmp.eq.s32.totalorder %s19, 0
      %p53 = por %p51, %p52
      %p54 = scmp.ne.s32.totalorder %s43, %s46
      %p55 = scmp.eq.s32.totalorder %s24, 1
      %p56 = por %p54, %p55
      %p57 = scmp.ne.s32.totalorder %s46, %s47
      %p58 = scmp.eq.s32.totalorder %s24, 0
      %p59 = por %p57, %p58
      %p60 = scmp.ne.s32.totalorder %s46, %s47
      %p61 = scmp.eq.s32.totalorder %s25, 1
      %p62 = por %p60, %p61
      %p64 = scmp.ne.s32.totalorder %s47, %s63
      %p65 = scmp.eq.s32.totalorder %s25, 0
      %p66 = por %p64, %p65
      %s67 = ssub.s32 %s26, %s38
      %s68 = ssub.s32 %s27, %s34
      %s69 = sor.u32 %s67, %s68
      %p70 = scmp.eq.s32.totalorder %s69, 0
      %s72 = sadd.s32 %s71, 1
      %s73 = scalar_select %p70, %s71, %s72
      %p76 = pneg %p70
      %p77 = scmp.eq.s32.totalorder %s19, 1
      %p78 = por %p76, %p77
      %p79 = scmp.ne.s32.totalorder %s71, %s74
      %p80 = scmp.eq.s32.totalorder %s19, 0
      %p81 = por %p79, %p80
      %p82 = scmp.ne.s32.totalorder %s71, %s74
      %p83 = scmp.eq.s32.totalorder %s24, 1
      %p84 = por %p82, %p83
      %p85 = scmp.ne.s32.totalorder %s74, %s75
      %p86 = scmp.eq.s32.totalorder %s24, 0
      %p87 = por %p85, %p86
      %p88 = scmp.ne.s32.totalorder %s74, %s75
      %p89 = scmp.eq.s32.totalorder %s25, 1
      %p90 = por %p88, %p89
      %p92 = scmp.ne.s32.totalorder %s75, %s91
      %p93 = scmp.eq.s32.totalorder %s25, 0
      %p94 = por %p92, %p93
      %s95 = ssub.s32 %s27, %s34
      %p96 = scmp.eq.s32.totalorder %s95, 0
      %s98 = sadd.s32 %s97, 1
      %s99 = scalar_select %p96, %s97, %s98
      %p102 = pneg %p96
      %p103 = scmp.eq.s32.totalorder %s19, 1
      %p104 = por %p102, %p103
      %p105 = scmp.ne.s32.totalorder %s97, %s100
      %p106 = scmp.eq.s32.totalorder %s19, 0
      %p107 = por %p105, %p106
      %p108 = scmp.ne.s32.totalorder %s97, %s100
      %p109 = scmp.eq.s32.totalorder %s24, 1
      %p110 = por %p108, %p109
      %p111 = scmp.ne.s32.totalorder %s100, %s101
      %p112 = scmp.eq.s32.totalorder %s24, 0
      %p113 = por %p111, %p112
      %p114 = scmp.ne.s32.totalorder %s100, %s101
      %p115 = scmp.eq.s32.totalorder %s25, 1
      %p116 = por %p114, %p115
      %p118 = scmp.ne.s32.totalorder %s101, %s117
      %p119 = scmp.eq.s32.totalorder %s25, 0
      %p120 = por %p118, %p119
      %s121 = ssub.s32 %s27, %s34
      %p122 = scmp.eq.s32.totalorder %s121, 0
      %s124 = sadd.s32 %s123, 1
      %s125 = scalar_select %p122, %s123, %s124
      %p128 = pneg %p122
      %p129 = scmp.eq.s32.totalorder %s19, 1
      %p130 = por %p128, %p129
      %p131 = scmp.ne.s32.totalorder %s123, %s126
      %p132 = scmp.eq.s32.totalorder %s19, 0
      %p133 = por %p131, %p132
      %p134 = scmp.ne.s32.totalorder %s123, %s126
      %p135 = scmp.eq.s32.totalorder %s24, 1
      %p136 = por %p134, %p135
      %p137 = scmp.ne.s32.totalorder %s126, %s127
      %p138 = scmp.eq.s32.totalorder %s24, 0
      %p139 = por %p137, %p138
      %p140 = scmp.ne.s32.totalorder %s126, %s127
      %p141 = scmp.eq.s32.totalorder %s25, 1
      %p142 = por %p140, %p141
      %p144 = scmp.ne.s32.totalorder %s127, %s143
      %p145 = scmp.eq.s32.totalorder %s25, 0
      %p146 = por %p144, %p145
      %s147 = ssub.s32 %s26, %s38
      %s148 = ssub.s32 %s27, %s34
      %s149 = sor.u32 %s147, %s148
      %p150 = scmp.eq.s32.totalorder %s149, 0
      %s152 = sadd.s32 %s151, 1
      %s153 = scalar_select %p150, %s151, %s152
      %p156 = pneg %p150
      %p157 = scmp.eq.s32.totalorder %s19, 1
      %p158 = por %p156, %p157
      %p159 = scmp.ne.s32.totalorder %s151, %s154
      %p160 = scmp.eq.s32.totalorder %s19, 0
      %p161 = por %p159, %p160
      %p162 = scmp.ne.s32.totalorder %s151, %s154
      %p163 = scmp.eq.s32.totalorder %s24, 1
      %p164 = por %p162, %p163
      %p165 = scmp.ne.s32.totalorder %s154, %s155
      %p166 = scmp.eq.s32.totalorder %s24, 0
      %p167 = por %p165, %p166
      %p168 = scmp.ne.s32.totalorder %s154, %s155
      %p169 = scmp.eq.s32.totalorder %s25, 1
      %p170 = por %p168, %p169
      %p172 = scmp.ne.s32.totalorder %s155, %s171
      %p173 = scmp.eq.s32.totalorder %s25, 0
      %p174 = por %p172, %p173
      %p175 = scmp.le.s32.totalorder 1, %s19
      %p176 = scmp.lt.s32.totalorder %s19, 3
      %p177 = pnand %p175, %p176
      %p178 = pneg %p177
      // Predicated region
      $region9: #{tpu_custom_call.1} parent=5 // pred_check
        _
      $region10: #{tpu_custom_call.1} parent=5 // pred_check_branch
        %180 = sbr.rel (%p177) target = $region12
      $region11: #{tpu_custom_call.1} parent=5 // pred_region
        %s181 = ssub.s32 %s19, 1
        // Predicated region
        $region13: #{tpu_custom_call.1} parent=11 // pred_check
          %p182 = pneg %p113
        $region14: #{tpu_custom_call.1} parent=11 // pred_check_branch
          %184 = sbr.rel (%p182) target = $region16
        $region15: #{tpu_custom_call.1} parent=11 // pred_region
          %s185 = smul.u32 2, %s29
          %p186 = scmp.lt.s32.totalorder %s185, 1
          %s187 = scalar_select %p186, %s185, 1
          %s188 = smul.addr %s187, 2
          %s189 = smul.addr %s188, 8
          %s190 = scalar_lea.vmem %s2, %s189
          %s191 = smul.u32 2, %s29
        $region16: #{tpu_custom_call.1} parent=11 // pred_fallthru
          _
        // Predicated region
        $region17: #{tpu_custom_call.1} parent=11 // pred_check
          %p192 = pneg %p139
        $region18: #{tpu_custom_call.1} parent=11 // pred_check_branch
          %194 = sbr.rel (%p192) target = $region20
        $region19: #{tpu_custom_call.1} parent=11 // pred_region
          %s195 = smul.u32 2, %s29
          %p196 = scmp.lt.s32.totalorder %s195, 1
          %s197 = scalar_select %p196, %s195, 1
          %s198 = scalar_lea.vmem %s3, %s197
          %s199 = smul.u32 2, %s29
        $region20: #{tpu_custom_call.1} parent=11 // pred_fallthru
          _
      $region12: #{tpu_custom_call.1} parent=5 // pred_fallthru
        _
      %p200 = scmp.lt.s32.totalorder %s19, 2
      // Predicated region
      $region21: #{tpu_custom_call.1} parent=5 // pred_check
        %p201 = pneg %p200
      $region22: #{tpu_custom_call.1} parent=5 // pred_check_branch
        %203 = sbr.rel (%p201) target = $region24
      $region23: #{tpu_custom_call.1} parent=5 // pred_region
        // Predicated region
        $region25: #{tpu_custom_call.1} parent=23 // pred_check
          %p204 = pneg %p53
        $region26: #{tpu_custom_call.1} parent=23 // pred_check_branch
          %206 = sbr.rel (%p204) target = $region28
        $region27: #{tpu_custom_call.1} parent=23 // pred_region
          %s207 = sand.u32 %s43, 1
          %s208 = scalar_lea.sflag [#allocation4], %s207
          %s209 = sand.u32 %s43, 1
          %s210 = smul.addr %s209, 32
          %s211 = scalar_lea.vmem [#allocation3], %s210
          %s212 = smul.u32 2, %s27
          %s214 = ssub.s32 512, 512
          %215 = vsyncadd %s208, %s214
          %s216 = smul.addr %s212, 2
          %s217 = smul.addr %s26, 4
          %s218 = sadd.s32 %s216, %s217
          %s219 = smul.addr %s218, 128
          %s220 = scalar_lea.hbm %s0, %s219
          %s221 = sshll.u32 %s211, 4
          %s222 = int_to_ptr.vmem [resolvable:$true] %s221
          %227 = dma.hbm_to_vmem [thread:$0]  %s220, 512, %s222, %s208, 128, 128, 8
        $region28: #{tpu_custom_call.1} parent=23 // pred_fallthru
          _
        // Predicated region
        $region29: #{tpu_custom_call.1} parent=23 // pred_check
          %p228 = pneg %p81
        $region30: #{tpu_custom_call.1} parent=23 // pred_check_branch
          %230 = sbr.rel (%p228) target = $region32
        $region31: #{tpu_custom_call.1} parent=23 // pred_region
          %s231 = sand.u32 %s71, 1
          %s232 = scalar_lea.sflag [#allocation7], %s231
          %s233 = sand.u32 %s71, 1
          %s234 = smul.addr %s233, 32
          %s235 = scalar_lea.vmem [#allocation6], %s234
          %s236 = smul.u32 2, %s27
          %s238 = ssub.s32 512, 512
          %239 = vsyncadd %s232, %s238
          %s240 = smul.addr %s236, 2
          %s241 = smul.addr %s26, 4
          %s242 = sadd.s32 %s240, %s241
          %s243 = smul.addr %s242, 128
          %s244 = scalar_lea.hbm %s1, %s243
          %s245 = sshll.u32 %s235, 4
          %s246 = int_to_ptr.vmem [resolvable:$true] %s245
          %251 = dma.hbm_to_vmem [thread:$0]  %s244, 512, %s246, %s232, 128, 128, 8
        $region32: #{tpu_custom_call.1} parent=23 // pred_fallthru
          _
      $region24: #{tpu_custom_call.1} parent=5 // pred_fallthru
        _
      %p252 = scmp.le.s32.totalorder 1, %s19
      %p253 = scmp.lt.s32.totalorder %s19, 3
      %p254 = pnand %p252, %p253
      %p255 = pneg %p254
      // Predicated region
      $region33: #{tpu_custom_call.1} parent=5 // pred_check
        _
      $region34: #{tpu_custom_call.1} parent=5 // pred_check_branch
        %257 = sbr.rel (%p254) target = $region36
      $region35: #{tpu_custom_call.1} parent=5 // pred_region
        %s258 = ssub.s32 %s19, 1
        %s259 = sand.u32 %s46, 1
        %s260 = scalar_lea.sflag [#allocation4], %s259
        %s261 = sand.u32 %s46, 1
        %s262 = smul.addr %s261, 32
        %s263 = scalar_lea.vmem [#allocation3], %s262
        // Predicated region
        $region37: #{tpu_custom_call.1} parent=35 // pred_check
          %p264 = pneg %p59
        $region38: #{tpu_custom_call.1} parent=35 // pred_check_branch
          %266 = sbr.rel (%p264) target = $region40
        $region39: #{tpu_custom_call.1} parent=35 // pred_region
          %267 = dma.done %s260, 512
        $region40: #{tpu_custom_call.1} parent=35 // pred_fallthru
          _
        %s268 = sand.u32 %s74, 1
        %s269 = scalar_lea.sflag [#allocation7], %s268
        %s270 = sand.u32 %s74, 1
        %s271 = smul.addr %s270, 32
        %s272 = scalar_lea.vmem [#allocation6], %s271
        // Predicated region
        $region41: #{tpu_custom_call.1} parent=35 // pred_check
          %p273 = pneg %p87
        $region42: #{tpu_custom_call.1} parent=35 // pred_check_branch
          %275 = sbr.rel (%p273) target = $region44
        $region43: #{tpu_custom_call.1} parent=35 // pred_region
          %276 = dma.done %s269, 512
        $region44: #{tpu_custom_call.1} parent=35 // pred_fallthru
          _
        %s277 = sand.u32 %s46, 1
        %s278 = scalar_lea.sflag [#allocation4], %s277
        %s279 = sand.u32 %s46, 1
        %s280 = smul.addr %s279, 32
        %s281 = scalar_lea.vmem [#allocation3], %s280
        %p282 = pneg %p59
        %p283 = pneg %p56
        %s284 = sand.u32 %s74, 1
        %s285 = scalar_lea.sflag [#allocation7], %s284
        %s286 = sand.u32 %s74, 1
        %s287 = smul.addr %s286, 32
        %s288 = scalar_lea.vmem [#allocation6], %s287
        %p289 = pneg %p87
        %p290 = pneg %p84
        %s291 = smul.u32 2, %s29
        %p292 = scmp.lt.s32.totalorder %s291, 1
        %s293 = scalar_select %p292, %s291, 1
        %s294 = smul.addr %s293, 2
        %s295 = smul.addr %s294, 8
        %s296 = scalar_lea.vmem %s2, %s295
        %p297 = pneg %p113
        %p298 = pneg %p110
        %s299 = smul.u32 2, %s29
        %p300 = scmp.lt.s32.totalorder %s299, 1
        %s301 = scalar_select %p300, %s299, 1
        %s302 = scalar_lea.vmem %s3, %s301
        %p303 = pneg %p139
        %p304 = pneg %p136
        %p305 = pneg %p167
        %p306 = pneg %p164
        %s307 = sand.u32 %s154, 1
        %s308 = scalar_lea.sflag [#allocation5], %s307
        %s309 = sand.u32 %s154, 1
        %s310 = smul.addr %s309, 32
        %s311 = scalar_lea.vmem [#allocation8], %s310
        %s312 = smul.u32 2, %s29
        %s313 = smul.u32 2, %s29
        %s314 = smul.u32 2, %s29
        %p315 = scmp.lt.s32.totalorder %s314, 1
        %s316 = scalar_select %p315, %s314, 1
        %s317 = smul.addr %s316, 2
        %s318 = smul.addr %s317, 8
        %s319 = scalar_lea.vmem %s2, %s318
        %s320 = smul.u32 2, %s29
        %s321 = smul.u32 2, %s29
        %p322 = scmp.lt.s32.totalorder %s321, 1
        %s323 = scalar_select %p322, %s321, 1
        %s324 = scalar_lea.vmem %s3, %s323
        %s325 = smul.u32 2, %s29
        %s326 = smul.u32 2, %s29
        %vm327 = vcmask 588800
        %328 = vst.msk [vmem:[#allocation2] sm:$0xff] %vm327, 0.0
        %329 = vst.msk [vmem:[#allocation2 + $0x8] sm:$0xff] %vm327, 0.0
        %vm330 = vcmask 582656
        %331 = vst.msk [vmem:[#allocation2 + $0x10] sm:$0x3] %vm330, 0.0
        %332 = vst.msk [vmem:[#allocation2 + $0x18] sm:$0xff] %vm327, 0.0
        %333 = vst.msk [vmem:[#allocation2 + $0x20] sm:$0xff] %vm327, 0.0
        %334 = vst.msk [vmem:[#allocation2 + $0x28] sm:$0x3] %vm330, 0.0
        %v335 = vld [vmem:[%s272] sm:$0xff]
        %v336 = vld [vmem:[%s272 + $0x8] sm:$0xff]
        %v337 = vld [vmem:[%s272 + $0x10] sm:$0xff]
        %v338 = vld [vmem:[%s272 + $0x18] sm:$0xff]
        %343 = vrot.lane.b32.xlu0 %v335, 4
        %v344 = vpop.permute.xlu0 %343
        %345 = vrot.lane.b32.xlu0 %v336, 4
        %v346 = vpop.permute.xlu0 %345
        %347 = vrot.lane.b32.xlu0 %v337, 4
        %v348 = vpop.permute.xlu0 %347
        %349 = vrot.lane.b32.xlu0 %v338, 4
        %v350 = vpop.permute.xlu0 %349
        %vm355 = vcmask 556064
        %356 = vst.msk [vmem:[#allocation2 + $0x1] sm:$0xff] %vm355, %v344
        %357 = vst.msk [vmem:[#allocation2 + $0x9] sm:$0xff] %vm355, %v346
        %358 = vst.msk [vmem:[#allocation2 + $0x19] sm:$0xff] %vm355, %v348
        %359 = vst.msk [vmem:[#allocation2 + $0x21] sm:$0xff] %vm355, %v350
        %v360 = vld [vmem:[%s324] sm:$0x1]
        %v361 = vld [vmem:[%s324 + $0x1] sm:$0x1]
        %v364 = vlaneseq
        %v365 = vshrl.u32 %v364, 7
        %v366 = vsub.s32 0, %v365
        %v367 = vrot.slane %v360, %v366
        %v368 = vlaneseq
        %v369 = vshrl.u32 %v368, 7
        %v370 = vsub.s32 0, %v369
        %v371 = vrot.slane %v361, %v370
        %v374 = vld [vmem:[%s319] sm:$0x1]
        %v375 = vld [vmem:[%s319 + $0x10] sm:$0x1]
        %v376 = vld [vmem:[#allocation2] sm:$0xff]
        %v377 = vld [vmem:[#allocation2 + $0x8] sm:$0xff]
        %v378 = vld [vmem:[#allocation2 + $0x18] sm:$0xff]
        %v379 = vld [vmem:[#allocation2 + $0x20] sm:$0xff]
        %v380 = vlaneseq
        %v381 = vshrl.u32 %v380, 7
        %v382 = vsub.s32 0, %v381
        %v383 = vrot.slane %v374, %v382
        %v384 = vlaneseq
        %v385 = vshrl.u32 %v384, 7
        %v386 = vsub.s32 0, %v385
        %v387 = vrot.slane %v375, %v386
        %v388 = vmul.f32 %v376, %v383
        %v389 = vmul.f32 %v377, %v383
        %v390 = vmul.f32 %v378, %v387
        %v391 = vmul.f32 %v379, %v387
        %v392 = vadd.f32 %v367, %v388
        %v393 = vadd.f32 %v367, %v389
        %v394 = vadd.f32 %v371, %v390
        %v395 = vadd.f32 %v371, %v391
        %v396 = vld [vmem:[%s319 + $0x1] sm:$0x1]
        %v397 = vld [vmem:[%s319 + $0x11] sm:$0x1]
        %v398 = vlaneseq
        %v399 = vshrl.u32 %v398, 7
        %v400 = vsub.s32 0, %v399
        %v401 = vrot.slane %v396, %v400
        %v402 = vlaneseq
        %v403 = vshrl.u32 %v402, 7
        %v404 = vsub.s32 0, %v403
        %v405 = vrot.slane %v397, %v404
        %408 = vrot.lane.b32.xlu0 %v401, 4
        %v409 = vpop.permute.xlu0 %408
        %410 = vrot.lane.b32.xlu0 %v405, 4
        %v411 = vpop.permute.xlu0 %410
        %v414 = vmul.f32 %v376, %v409
        %v415 = vmul.f32 %v377, %v409
        %v416 = vmul.f32 %v378, %v411
        %v417 = vmul.f32 %v379, %v411
        %422 = vrot.lane.b32.xlu0 %v414, 124
        %v423 = vpop.permute.xlu0 %422
        %424 = vrot.lane.b32.xlu0 %v415, 124
        %v425 = vpop.permute.xlu0 %424
        %426 = vrot.lane.b32.xlu0 %v416, 124
        %v427 = vpop.permute.xlu0 %426
        %428 = vrot.lane.b32.xlu0 %v417, 124
        %v429 = vpop.permute.xlu0 %428
        %v434 = vadd.f32 %v392, %v423
        %v435 = vadd.f32 %v393, %v425
        %v436 = vadd.f32 %v394, %v427
        %v437 = vadd.f32 %v395, %v429
        %v438 = vld [vmem:[%s319 + $0x2] sm:$0x1]
        %v439 = vld [vmem:[%s319 + $0x12] sm:$0x1]
        %v440 = vlaneseq
        %v441 = vshrl.u32 %v440, 7
        %v442 = vsub.s32 0, %v441
        %v443 = vrot.slane %v438, %v442
        %v444 = vlaneseq
        %v445 = vshrl.u32 %v444, 7
        %v446 = vsub.s32 0, %v445
        %v447 = vrot.slane %v439, %v446
        %450 = vrot.lane.b32.xlu0 %v443, 8
        %v451 = vpop.permute.xlu0 %450
        %452 = vrot.lane.b32.xlu0 %v447, 8
        %v453 = vpop.permute.xlu0 %452
        %v456 = vmul.f32 %v376, %v451
        %v457 = vmul.f32 %v377, %v451
        %v458 = vmul.f32 %v378, %v453
        %v459 = vmul.f32 %v379, %v453
        %464 = vrot.lane.b32.xlu0 %v456, 120
        %v465 = vpop.permute.xlu0 %464
        %466 = vrot.lane.b32.xlu0 %v457, 120
        %v467 = vpop.permute.xlu0 %466
        %468 = vrot.lane.b32.xlu0 %v458, 120
        %v469 = vpop.permute.xlu0 %468
        %470 = vrot.lane.b32.xlu0 %v459, 120
        %v471 = vpop.permute.xlu0 %470
        %v476 = vadd.f32 %v434, %v465
        %v477 = vadd.f32 %v435, %v467
        %v478 = vadd.f32 %v436, %v469
        %v479 = vadd.f32 %v437, %v471
        %v480 = vld [vmem:[%s319 + $0x3] sm:$0x1]
        %v481 = vld [vmem:[%s319 + $0x13] sm:$0x1]
        %v482 = vld [vmem:[#allocation2 + $0x1] sm:$0xff]
        %v483 = vld [vmem:[#allocation2 + $0x9] sm:$0xff]
        %v484 = vld [vmem:[#allocation2 + $0x19] sm:$0xff]
        %v485 = vld [vmem:[#allocation2 + $0x21] sm:$0xff]
        %v486 = vlaneseq
        %v487 = vshrl.u32 %v486, 7
        %v488 = vsub.s32 0, %v487
        %v489 = vrot.slane %v480, %v488
        %v490 = vlaneseq
        %v491 = vshrl.u32 %v490, 7
        %v492 = vsub.s32 0, %v491
        %v493 = vrot.slane %v481, %v492
        %v494 = vmul.f32 %v482, %v489
        %v495 = vmul.f32 %v483, %v489
        %v496 = vmul.f32 %v484, %v493
        %v497 = vmul.f32 %v485, %v493
        %v498 = vadd.f32 %v476, %v494
        %v499 = vadd.f32 %v477, %v495
        %v500 = vadd.f32 %v478, %v496
        %v501 = vadd.f32 %v479, %v497
        %v502 = vld [vmem:[%s319 + $0x4] sm:$0x1]
        %v503 = vld [vmem:[%s319 + $0x14] sm:$0x1]
        %v504 = vlaneseq
        %v505 = vshrl.u32 %v504, 7
        %v506 = vsub.s32 0, %v505
        %v507 = vrot.slane %v502, %v506
        %v508 = vlaneseq
        %v509 = vshrl.u32 %v508, 7
        %v510 = vsub.s32 0, %v509
        %v511 = vrot.slane %v503, %v510
        %514 = vrot.lane.b32.xlu0 %v507, 4
        %v515 = vpop.permute.xlu0 %514
        %516 = vrot.lane.b32.xlu0 %v511, 4
        %v517 = vpop.permute.xlu0 %516
        %v520 = vmul.f32 %v482, %v515
        %v521 = vmul.f32 %v483, %v515
        %v522 = vmul.f32 %v484, %v517
        %v523 = vmul.f32 %v485, %v517
        %528 = vrot.lane.b32.xlu0 %v520, 124
        %v529 = vpop.permute.xlu0 %528
        %530 = vrot.lane.b32.xlu0 %v521, 124
        %v531 = vpop.permute.xlu0 %530
        %532 = vrot.lane.b32.xlu0 %v522, 124
        %v533 = vpop.permute.xlu0 %532
        %534 = vrot.lane.b32.xlu0 %v523, 124
        %v535 = vpop.permute.xlu0 %534
        %v540 = vadd.f32 %v498, %v529
        %v541 = vadd.f32 %v499, %v531
        %v542 = vadd.f32 %v500, %v533
        %v543 = vadd.f32 %v501, %v535
        %v544 = vld [vmem:[%s319 + $0x5] sm:$0x1]
        %v545 = vld [vmem:[%s319 + $0x15] sm:$0x1]
        %v546 = vlaneseq
        %v547 = vshrl.u32 %v546, 7
        %v548 = vsub.s32 0, %v547
        %v549 = vrot.slane %v544, %v548
        %v550 = vlaneseq
        %v551 = vshrl.u32 %v550, 7
        %v552 = vsub.s32 0, %v551
        %v553 = vrot.slane %v545, %v552
        %556 = vrot.lane.b32.xlu0 %v549, 8
        %v557 = vpop.permute.xlu0 %556
        %558 = vrot.lane.b32.xlu0 %v553, 8
        %v559 = vpop.permute.xlu0 %558
        %v562 = vmul.f32 %v482, %v557
        %v563 = vmul.f32 %v483, %v557
        %v564 = vmul.f32 %v484, %v559
        %v565 = vmul.f32 %v485, %v559
        %570 = vrot.lane.b32.xlu0 %v562, 120
        %v571 = vpop.permute.xlu0 %570
        %572 = vrot.lane.b32.xlu0 %v563, 120
        %v573 = vpop.permute.xlu0 %572
        %574 = vrot.lane.b32.xlu0 %v564, 120
        %v575 = vpop.permute.xlu0 %574
        %576 = vrot.lane.b32.xlu0 %v565, 120
        %v577 = vpop.permute.xlu0 %576
        %v582 = vadd.f32 %v540, %v571
        %v583 = vadd.f32 %v541, %v573
        %v584 = vadd.f32 %v542, %v575
        %v585 = vadd.f32 %v543, %v577
        %v586 = vld [vmem:[%s319 + $0x6] sm:$0x1]
        %v587 = vld [vmem:[%s319 + $0x16] sm:$0x1]
        %v588 = vld [vmem:[#allocation2 + $0x2] sm:$0xff]
        %v589 = vld [vmem:[#allocation2 + $0xa] sm:$0xff]
        %v590 = vld [vmem:[#allocation2 + $0x1a] sm:$0xff]
        %v591 = vld [vmem:[#allocation2 + $0x22] sm:$0xff]
        %v592 = vlaneseq
        %v593 = vshrl.u32 %v592, 7
        %v594 = vsub.s32 0, %v593
        %v595 = vrot.slane %v586, %v594
        %v596 = vlaneseq
        %v597 = vshrl.u32 %v596, 7
        %v598 = vsub.s32 0, %v597
        %v599 = vrot.slane %v587, %v598
        %v600 = vmul.f32 %v588, %v595
        %v601 = vmul.f32 %v589, %v595
        %v602 = vmul.f32 %v590, %v599
        %v603 = vmul.f32 %v591, %v599
        %v604 = vadd.f32 %v582, %v600
        %v605 = vadd.f32 %v583, %v601
        %v606 = vadd.f32 %v584, %v602
        %v607 = vadd.f32 %v585, %v603
        %v608 = vld [vmem:[%s319 + $0x7] sm:$0x1]
        %v609 = vld [vmem:[%s319 + $0x17] sm:$0x1]
        %v610 = vlaneseq
        %v611 = vshrl.u32 %v610, 7
        %v612 = vsub.s32 0, %v611
        %v613 = vrot.slane %v608, %v612
        %v614 = vlaneseq
        %v615 = vshrl.u32 %v614, 7
        %v616 = vsub.s32 0, %v615
        %v617 = vrot.slane %v609, %v616
        %620 = vrot.lane.b32.xlu0 %v613, 4
        %v621 = vpop.permute.xlu0 %620
        %622 = vrot.lane.b32.xlu0 %v617, 4
        %v623 = vpop.permute.xlu0 %622
        %v626 = vmul.f32 %v588, %v621
        %v627 = vmul.f32 %v589, %v621
        %v628 = vmul.f32 %v590, %v623
        %v629 = vmul.f32 %v591, %v623
        %634 = vrot.lane.b32.xlu0 %v626, 124
        %v635 = vpop.permute.xlu0 %634
        %636 = vrot.lane.b32.xlu0 %v627, 124
        %v637 = vpop.permute.xlu0 %636
        %638 = vrot.lane.b32.xlu0 %v628, 124
        %v639 = vpop.permute.xlu0 %638
        %640 = vrot.lane.b32.xlu0 %v629, 124
        %v641 = vpop.permute.xlu0 %640
        %v646 = vadd.f32 %v604, %v635
        %v647 = vadd.f32 %v605, %v637
        %v648 = vadd.f32 %v606, %v639
        %v649 = vadd.f32 %v607, %v641
        %v650 = vld [vmem:[%s319 + $0x8] sm:$0x1]
        %v651 = vld [vmem:[%s319 + $0x18] sm:$0x1]
        %v652 = vlaneseq
        %v653 = vshrl.u32 %v652, 7
        %v654 = vsub.s32 0, %v653
        %v655 = vrot.slane %v650, %v654
        %v656 = vlaneseq
        %v657 = vshrl.u32 %v656, 7
        %v658 = vsub.s32 0, %v657
        %v659 = vrot.slane %v651, %v658
        %662 = vrot.lane.b32.xlu0 %v655, 8
        %v663 = vpop.permute.xlu0 %662
        %664 = vrot.lane.b32.xlu0 %v659, 8
        %v665 = vpop.permute.xlu0 %664
        %v668 = vmul.f32 %v588, %v663
        %v669 = vmul.f32 %v589, %v663
        %v670 = vmul.f32 %v590, %v665
        %v671 = vmul.f32 %v591, %v665
        %676 = vrot.lane.b32.xlu0 %v668, 120
        %v677 = vpop.permute.xlu0 %676
        %678 = vrot.lane.b32.xlu0 %v669, 120
        %v679 = vpop.permute.xlu0 %678
        %680 = vrot.lane.b32.xlu0 %v670, 120
        %v681 = vpop.permute.xlu0 %680
        %682 = vrot.lane.b32.xlu0 %v671, 120
        %v683 = vpop.permute.xlu0 %682
        %v688 = vadd.f32 %v646, %v677
        %v689 = vadd.f32 %v647, %v679
        %v690 = vadd.f32 %v648, %v681
        %v691 = vadd.f32 %v649, %v683
        %v692 = vld [vmem:[%s263] sm:$0xff]
        %v693 = vld [vmem:[%s263 + $0x8] sm:$0xff]
        %v694 = vld [vmem:[%s263 + $0x10] sm:$0xff]
        %v695 = vld [vmem:[%s263 + $0x18] sm:$0xff]
        %v696 = vmul.f32 %v692, %v688
        %v697 = vmul.f32 %v693, %v689
        %v698 = vmul.f32 %v694, %v690
        %v699 = vmul.f32 %v695, %v691
        %vm700 = vcmask 523264
        %701 = vst.msk [vmem:[%s311] sm:$0xff] %vm700, %v696
        %702 = vst.msk [vmem:[%s311 + $0x8] sm:$0xff] %vm700, %v697
        %703 = vst.msk [vmem:[%s311 + $0x10] sm:$0xff] %vm700, %v698
        %704 = vst.msk [vmem:[%s311 + $0x18] sm:$0xff] %vm700, %v699
        %s705 = sand.u32 %s154, 1
        %s706 = scalar_lea.sflag [#allocation5], %s705
        %s707 = sand.u32 %s154, 1
        %s708 = smul.addr %s707, 32
        %s709 = scalar_lea.vmem [#allocation8], %s708
        // Predicated region
        $region45: #{tpu_custom_call.1} parent=35 // pred_check
          %p710 = pneg %p164
        $region46: #{tpu_custom_call.1} parent=35 // pred_check_branch
          %712 = sbr.rel (%p710) target = $region48
        $region47: #{tpu_custom_call.1} parent=35 // pred_region
          %s713 = smul.u32 2, %s29
          %s715 = ssub.s32 512, 512
          %716 = vsyncadd %s706, %s715
          %s717 = smul.addr %s713, 2
          %s718 = smul.addr %s28, 4
          %s719 = sadd.s32 %s717, %s718
          %s720 = smul.addr %s719, 128
          %s721 = scalar_lea.hbm %s4, %s720
          %s722 = sshll.u32 %s709, 4
          %s723 = int_to_ptr.vmem [resolvable:$true] %s722
          %728 = dma.vmem_to_hbm [thread:$0]  %s723, 512, %s721, %s706, 128, 128, 8
        $region48: #{tpu_custom_call.1} parent=35 // pred_fallthru
          _
      $region36: #{tpu_custom_call.1} parent=5 // pred_fallthru
        _
      %p729 = scmp.le.s32.totalorder 2, %s19
      // Predicated region
      $region49: #{tpu_custom_call.1} parent=5 // pred_check
        %p730 = pneg %p729
      $region50: #{tpu_custom_call.1} parent=5 // pred_check_branch
        %732 = sbr.rel (%p730) target = $region52
      $region51: #{tpu_custom_call.1} parent=5 // pred_region
        %s733 = ssub.s32 %s19, 2
        // Predicated region
        $region53: #{tpu_custom_call.1} parent=51 // pred_check
          %p734 = pneg %p170
        $region54: #{tpu_custom_call.1} parent=51 // pred_check_branch
          %736 = sbr.rel (%p734) target = $region56
        $region55: #{tpu_custom_call.1} parent=51 // pred_region
          %s737 = sand.u32 %s155, 1
          %s738 = scalar_lea.sflag [#allocation5], %s737
          %s739 = sand.u32 %s155, 1
          %s740 = smul.addr %s739, 32
          %s741 = scalar_lea.vmem [#allocation8], %s740
          %742 = dma.done %s738, 512
        $region56: #{tpu_custom_call.1} parent=51 // pred_fallthru
          _
      $region52: #{tpu_custom_call.1} parent=5 // pred_fallthru
        _
    $region6: #{tpu_custom_call.1} parent=1 // loop_footer
      %s23 = sadd.s32 1, %s19
    $region7: #{tpu_custom_call.1} parent=1 // loop_footer_branch
      %18 = sbr.rel target = $region3
    $region8: #{tpu_custom_call.1} parent=1 // loop_exit
      _
    %743 = vsyncpa [#allocation4], 1
    %s744 = scalar_lea.sflag [#allocation4], 1
    %745 = vsyncpa %s744, 1
    %746 = vsyncpa [#allocation7], 1
    %s747 = scalar_lea.sflag [#allocation7], 1
    %748 = vsyncpa %s747, 1
    %749 = vsyncpa [#allocation5], 1
    %s750 = scalar_lea.sflag [#allocation5], 1
    %751 = vsyncpa %s750, 1

</llo_original>
